<compile_context>
chip_gen: v6e
topology: v6e:2x2x1
jax: 0.10.0
libtpu: 0.0.40
codegen_flags: <defaults>
</compile_context>

<pallas_src>
import jax
import jax.numpy as jnp
import numpy as np
from jax.experimental import pallas as pl
from jax.experimental.pallas import tpu as pltpu


# ----------------------------------------------------------------------------
# Pallas kernel: fused GraphEmbedding forward for one row tile.
# Weights (w1/w2/w3/fc_w_t) and bias are VMEM-resident across the whole grid.
# ----------------------------------------------------------------------------

def _graph_embedding_kernel(x1_ref, x2_ref, x3_ref,
                            w1_ref, w2_ref, w3_ref,
                            fcw_t_ref, b_ref, o_ref):
    # y = x1@W1 + x2@W2 + x3@W3, accumulated in f32 on the MXU.
    y = jnp.dot(x1_ref[...], w1_ref[...], preferred_element_type=jnp.float32)
    y = y + jnp.dot(x2_ref[...], w2_ref[...], preferred_element_type=jnp.float32)
    y = y + jnp.dot(x3_ref[...], w3_ref[...], preferred_element_type=jnp.float32)
    # out = y @ fc_w^T + fc_b   (fc_w pre-transposed once in prepare_params)
    o_ref[...] = (jnp.dot(y, fcw_t_ref[...], preferred_element_type=jnp.float32)
                  + b_ref[...]).astype(o_ref.dtype)


# ----------------------------------------------------------------------------
# Wrapper
# ----------------------------------------------------------------------------

_VMEM_BUDGET = 32 * 1024 * 1024   # fits v5e/v6e/v7x scoped VMEM


def _round_up(x, m):
    return (x + m - 1) // m * m


def _pick_tm(n, d, vmem_budget=_VMEM_BUDGET):
    """Row-tile size: as close to 512 as VMEM allows, multiple of 8."""
    n8 = _round_up(max(n, 1), 8)
    resident = (4 * d * d + d) * 4          # 4 weight blocks + bias, f32
    per_row = 2 * (3 * d + d) * 4           # 3 input + 1 output row, dbl-buffered
    tm = (vmem_budget - resident) // max(per_row, 1)
    tm = max(8, (tm // 8) * 8)
    return int(min(tm, 512, n8))


def prepare_params(params):
    """One-time packing of static model tensors (hoisted out of the fwd path)."""
    d = params["fc_b"].shape[0]
    return {
        "w1": params["weight1"],
        "w2": params["weight2"],
        "w3": params["weight3"],
        "fc_w_t": jnp.asarray(params["fc_w"].T),       # pre-transposed once
        "fc_b": params["fc_b"].reshape(1, d),          # 2-D for broadcast add
    }


def graph_embedding(x1, x2, x3, w1, w2, w3, fc_w_t, fc_b2, *, tm=None):
    """Fused forward.  x*: (N, D); w*: (D, D); fc_w_t: (D, D); fc_b2: (1, D)."""
    n, d = x1.shape
    if tm is None:
        tm = _pick_tm(n, d)

    grid = (pl.cdiv(n, tm),)

    row_spec = pl.BlockSpec((tm, d), lambda i: (i, 0))           # pipelined tiles
    w_spec = pl.BlockSpec((d, d), lambda i: (0, 0))              # VMEM-resident
    b_spec = pl.BlockSpec((1, d), lambda i: (0, 0))              # VMEM-resident

    cost = pl.CostEstimate(
        flops=2 * n * (3 * d) * d + 2 * n * d * d,
        transcendentals=0,
        bytes_accessed=(3 * n * d + 4 * d * d + d + n * d) * 4,
    )

    return pl.pallas_call(
        _graph_embedding_kernel,
        out_shape=jax.ShapeDtypeStruct((n, d), jnp.float32),
        grid=grid,
        in_specs=[row_spec, row_spec, row_spec,          # x1, x2, x3
                  w_spec, w_spec, w_spec,                # w1, w2, w3
                  w_spec, b_spec],                       # fc_w^T, bias
        out_specs=row_spec,
        compiler_params=pltpu.CompilerParams(
            dimension_semantics=("parallel",),           # 2 TCs on v7x
            vmem_limit_bytes=_VMEM_BUDGET,               # lift v5e's 16 MiB default
        ),
        cost_estimate=cost,
    )(x1, x2, x3, w1, w2, w3, fc_w_t, fc_b2)


# ----------------------------------------------------------------------------
# Parameter initialization (mirrors the PyTorch module) + pure-JAX reference
# ----------------------------------------------------------------------------

def init_params(key, input_size):
    k1, k2, k3, k4, k5 = jax.random.split(key, 5)
    bound = 1.0 / (input_size ** 0.5)
    return {
        "weight1": jax.random.normal(k1, (input_size, input_size), jnp.float32),
        "weight2": jax.random.normal(k2, (input_size, input_size), jnp.float32),
        "weight3": jax.random.normal(k3, (input_size, input_size), jnp.float32),
        # nn.Linear(input_size, input_size): weight (out, in), bias (out,)
        "fc_w": jax.random.uniform(k4, (input_size, input_size), jnp.float32,
                                   -bound, bound),
        "fc_b": jax.random.uniform(k5, (input_size,), jnp.float32,
                                   -bound, bound),
    }


def reference_forward(p, x1, x2, x3):
    y = x1 @ p["weight1"] + x2 @ p["weight2"] + x3 @ p["weight3"]
    return y @ p["fc_w"].T + p["fc_b"]


# ----------------------------------------------------------------------------
# Main
# ----------------------------------------------------------------------------

if __name__ == "__main__":
    key = jax.random.PRNGKey(0)
    k_param, k_x1, k_x2, k_x3 = jax.random.split(key, 4)

    N = 8             # batch of node rows
    INPUT_SIZE = 32   # feature dim

    params = init_params(k_param, INPUT_SIZE)
    packed = prepare_params(params)          # one-time, outside the fwd path

    x1 = jax.random.normal(k_x1, (N, INPUT_SIZE), jnp.float32)
    x2 = jax.random.normal(k_x2, (N, INPUT_SIZE), jnp.float32)
    x3 = jax.random.normal(k_x3, (N, INPUT_SIZE), jnp.float32)

    fwd = jax.jit(lambda pk, a, b, c: graph_embedding(
        a, b, c, pk["w1"], pk["w2"], pk["w3"], pk["fc_w_t"], pk["fc_b"]))

    y = fwd(packed, x1, x2, x3)
    jax.block_until_ready(y)

    assert y.shape == (N, INPUT_SIZE)
    y_ref = reference_forward(params, x1, x2, x3)
    np.testing.assert_allclose(np.asarray(y), np.asarray(y_ref),
                               rtol=1e-4, atol=1e-4)

    print("KERNEL_OK")
</pallas_src>

<mosaic_0001>
module attributes {stable_mosaic.version = 11 : i64} {
  func.func @_graph_embedding_kernel(%arg0: i32, %arg1: memref<8x32xf32, #tpu.memory_space<vmem>>, %arg2: memref<8x32xf32, #tpu.memory_space<vmem>>, %arg3: memref<8x32xf32, #tpu.memory_space<vmem>>, %arg4: memref<32x32xf32, #tpu.memory_space<vmem>>, %arg5: memref<32x32xf32, #tpu.memory_space<vmem>>, %arg6: memref<32x32xf32, #tpu.memory_space<vmem>>, %arg7: memref<32x32xf32, #tpu.memory_space<vmem>>, %arg8: memref<1x32xf32, #tpu.memory_space<vmem>>, %arg9: memref<8x32xf32, #tpu.memory_space<vmem>>) attributes {dimension_semantics = [#tpu.dimension_semantics<parallel>], iteration_bounds = array<i64: 1>, scalar_prefetch = 0 : i64, scratch_operands = 0 : i64, tpu.core_type = #tpu.core_type<tc>, window_params = [{transform_indices = @transform_0, window_bounds = array<i64: 8, 32>}, {transform_indices = @transform_1, window_bounds = array<i64: 8, 32>}, {transform_indices = @transform_2, window_bounds = array<i64: 8, 32>}, {pipeline_mode = #tpu.pipeline_mode<synchronous>, transform_indices = @transform_3, window_bounds = array<i64: 32, 32>}, {pipeline_mode = #tpu.pipeline_mode<synchronous>, transform_indices = @transform_4, window_bounds = array<i64: 32, 32>}, {pipeline_mode = #tpu.pipeline_mode<synchronous>, transform_indices = @transform_5, window_bounds = array<i64: 32, 32>}, {pipeline_mode = #tpu.pipeline_mode<synchronous>, transform_indices = @transform_6, window_bounds = array<i64: 32, 32>}, {pipeline_mode = #tpu.pipeline_mode<synchronous>, transform_indices = @transform_7, window_bounds = array<i64: 1, 32>}, {transform_indices = @transform_8, window_bounds = array<i64: 8, 32>}]} {
    %c0 = arith.constant 0 : index
    %c0_0 = arith.constant 0 : index
    %0 = vector.load %arg1[%c0, %c0_0] : memref<8x32xf32, #tpu.memory_space<vmem>>, vector<8x32xf32>
    %c0_1 = arith.constant 0 : index
    %c0_2 = arith.constant 0 : index
    %1 = vector.load %arg4[%c0_1, %c0_2] : memref<32x32xf32, #tpu.memory_space<vmem>>, vector<32x32xf32>
    %cst = arith.constant dense<0.000000e+00> : vector<8x32xf32>
    %2 = tpu.matmul %0, %1, %cst {dimension_numbers = #tpu.dot_dimension_numbers<[1], [0], [0], [1], [0, 0, 1, 1], [], []>} : vector<8x32xf32>, vector<32x32xf32>, vector<8x32xf32> -> vector<8x32xf32>
    %c0_3 = arith.constant 0 : index
    %c0_4 = arith.constant 0 : index
    %3 = vector.load %arg2[%c0_3, %c0_4] : memref<8x32xf32, #tpu.memory_space<vmem>>, vector<8x32xf32>
    %c0_5 = arith.constant 0 : index
    %c0_6 = arith.constant 0 : index
    %4 = vector.load %arg5[%c0_5, %c0_6] : memref<32x32xf32, #tpu.memory_space<vmem>>, vector<32x32xf32>
    %cst_7 = arith.constant dense<0.000000e+00> : vector<8x32xf32>
    %5 = tpu.matmul %3, %4, %cst_7 {dimension_numbers = #tpu.dot_dimension_numbers<[1], [0], [0], [1], [0, 0, 1, 1], [], []>} : vector<8x32xf32>, vector<32x32xf32>, vector<8x32xf32> -> vector<8x32xf32>
    %6 = arith.addf %2, %5 : vector<8x32xf32>
    %c0_8 = arith.constant 0 : index
    %c0_9 = arith.constant 0 : index
    %7 = vector.load %arg3[%c0_8, %c0_9] : memref<8x32xf32, #tpu.memory_space<vmem>>, vector<8x32xf32>
    %c0_10 = arith.constant 0 : index
    %c0_11 = arith.constant 0 : index
    %8 = vector.load %arg6[%c0_10, %c0_11] : memref<32x32xf32, #tpu.memory_space<vmem>>, vector<32x32xf32>
    %cst_12 = arith.constant dense<0.000000e+00> : vector<8x32xf32>
    %9 = tpu.matmul %7, %8, %cst_12 {dimension_numbers = #tpu.dot_dimension_numbers<[1], [0], [0], [1], [0, 0, 1, 1], [], []>} : vector<8x32xf32>, vector<32x32xf32>, vector<8x32xf32> -> vector<8x32xf32>
    %10 = arith.addf %6, %9 : vector<8x32xf32>
    %c0_13 = arith.constant 0 : index
    %c0_14 = arith.constant 0 : index
    %11 = vector.load %arg7[%c0_13, %c0_14] : memref<32x32xf32, #tpu.memory_space<vmem>>, vector<32x32xf32>
    %cst_15 = arith.constant dense<0.000000e+00> : vector<8x32xf32>
    %12 = tpu.matmul %10, %11, %cst_15 {dimension_numbers = #tpu.dot_dimension_numbers<[1], [0], [0], [1], [0, 0, 1, 1], [], []>} : vector<8x32xf32>, vector<32x32xf32>, vector<8x32xf32> -> vector<8x32xf32>
    %c0_16 = arith.constant 0 : index
    %c0_17 = arith.constant 0 : index
    %13 = vector.load %arg8[%c0_16, %c0_17] : memref<1x32xf32, #tpu.memory_space<vmem>>, vector<1x32xf32>
    %14 = vector.broadcast %13 : vector<1x32xf32> to vector<8x32xf32>
    %15 = arith.addf %12, %14 : vector<8x32xf32>
    %c0_18 = arith.constant 0 : index
    %c0_19 = arith.constant 0 : index
    %16 = vector.load %arg9[%c0_18, %c0_19] : memref<8x32xf32, #tpu.memory_space<vmem>>, vector<8x32xf32>
    tpu.vector_store %arg9[%c0_18, %c0_19], %15 {strides = array<i32>} : memref<8x32xf32, #tpu.memory_space<vmem>>, vector<8x32xf32>,
    return
  }
  func.func @transform_0(%arg0: i32) -> (i32, i32) {
    %c0_i32 = arith.constant 0 : i32
    %c0_i32_0 = arith.constant 0 : i32
    return %arg0, %c0_i32 : i32, i32
  }
  func.func @transform_1(%arg0: i32) -> (i32, i32) {
    %c0_i32 = arith.constant 0 : i32
    %c0_i32_0 = arith.constant 0 : i32
    return %arg0, %c0_i32 : i32, i32
  }
  func.func @transform_2(%arg0: i32) -> (i32, i32) {
    %c0_i32 = arith.constant 0 : i32
    %c0_i32_0 = arith.constant 0 : i32
    return %arg0, %c0_i32 : i32, i32
  }
  func.func @transform_3(%arg0: i32) -> (i32, i32) {
    %c0_i32 = arith.constant 0 : i32
    %c0_i32_0 = arith.constant 0 : i32
    %c0_i32_1 = arith.constant 0 : i32
    return %c0_i32, %c0_i32_0 : i32, i32
  }
  func.func @transform_4(%arg0: i32) -> (i32, i32) {
    %c0_i32 = arith.constant 0 : i32
    %c0_i32_0 = arith.constant 0 : i32
    %c0_i32_1 = arith.constant 0 : i32
    return %c0_i32, %c0_i32_0 : i32, i32
  }
  func.func @transform_5(%arg0: i32) -> (i32, i32) {
    %c0_i32 = arith.constant 0 : i32
    %c0_i32_0 = arith.constant 0 : i32
    %c0_i32_1 = arith.constant 0 : i32
    return %c0_i32, %c0_i32_0 : i32, i32
  }
  func.func @transform_6(%arg0: i32) -> (i32, i32) {
    %c0_i32 = arith.constant 0 : i32
    %c0_i32_0 = arith.constant 0 : i32
    %c0_i32_1 = arith.constant 0 : i32
    return %c0_i32, %c0_i32_0 : i32, i32
  }
  func.func @transform_7(%arg0: i32) -> (i32, i32) {
    %c0_i32 = arith.constant 0 : i32
    %c0_i32_0 = arith.constant 0 : i32
    %c0_i32_1 = arith.constant 0 : i32
    return %c0_i32, %c0_i32_0 : i32, i32
  }
  func.func @transform_8(%arg0: i32) -> (i32, i32) {
    %c0_i32 = arith.constant 0 : i32
    %c0_i32_0 = arith.constant 0 : i32
    return %arg0, %c0_i32 : i32, i32
  }
}

</mosaic_0001>

<llo_original>
// kernel: _lambda_.1
$region0: #{_lambda_.1}
  #allocation0 [shape = 'u32[]', space=smem, size = 0x4, offset = 0x4, fixed_abs, tag = 'smem constant byte address 0x4 - core index']
  #allocation1 [shape = 'u32[144,128]{1,0:T(1,128)}', space=vmem, size = 0x12000, scoped, tag = 'internal scratch']
  %s0 = inlined_call_operand.vmem [shape: f32[8,32], index: 0, kind: input, shape index: {}]
  %s1 = inlined_call_operand.hbm [shape: f32[8,32], index: 1, kind: input, shape index: {}]
  %s2 = inlined_call_operand.hbm [shape: f32[8,32], index: 2, kind: input, shape index: {}]
  %s3 = inlined_call_operand.hbm [shape: f32[32,32], index: 3, kind: input, shape index: {}]
  %s4 = inlined_call_operand.hbm [shape: f32[32,32], index: 4, kind: input, shape index: {}]
  %s5 = inlined_call_operand.hbm [shape: f32[32,32], index: 5, kind: input, shape index: {}]
  %s6 = inlined_call_operand.hbm [shape: f32[32,32], index: 6, kind: input, shape index: {}]
  %s7 = inlined_call_operand.hbm [shape: f32[1,32], index: 7, kind: input, shape index: {}]
  %s8 = inlined_call_operand.hbm [shape: f32[8,32], index: 8, kind: output, shape index: {}]
  %s9 = sld [smem:[#allocation0]]
  $region70: #{_lambda_.1} parent=0
    _
  %s11 = ssub.s32 1, %s9
  %s12 = scalar_select 0, %s11, %s9
  $region1: #{_lambda_.1} parent=0
    #allocation2 [shape = 'u8[4096]{0}', space=vmem, size = 0x1000, scoped, tag = 'input window, operand 1, single buffered']
    #allocation3 [shape = 's32[1]{0}', space=sflag, size = 0x4, scoped, tag = 'scoped memory for _lambda_.1']
    #allocation4 [shape = 's32[1]{0}', space=sflag, size = 0x4, scoped, tag = 'scoped memory for _lambda_.1']
    #allocation5 [shape = 'u8[4096]{0}', space=vmem, size = 0x1000, scoped, tag = 'input window, operand 2, single buffered']
    #allocation6 [shape = 's32[1]{0}', space=sflag, size = 0x4, scoped, tag = 'scoped memory for _lambda_.1']
    #allocation7 [shape = 'u8[16384]{0}', space=vmem, size = 0x4000, scoped, tag = 'input window, operand 3, single buffered']
    #allocation8 [shape = 'u8[16384]{0}', space=vmem, size = 0x4000, scoped, tag = 'input window, operand 4, single buffered']
    #allocation9 [shape = 's32[1]{0}', space=sflag, size = 0x4, scoped, tag = 'scoped memory for _lambda_.1']
    #allocation10 [shape = 'u8[16384]{0}', space=vmem, size = 0x4000, scoped, tag = 'input window, operand 5, single buffered']
    #allocation11 [shape = 'u8[16384]{0}', space=vmem, size = 0x4000, scoped, tag = 'input window, operand 6, single buffered']
    #allocation12 [shape = 's32[1]{0}', space=sflag, size = 0x4, scoped, tag = 'scoped memory for _lambda_.1']
    #allocation13 [shape = 'u8[512]{0}', space=vmem, size = 0x400, scoped, tag = 'input window, operand 7, single buffered']
    #allocation14 [shape = 'u8[4096]{0}', space=vmem, size = 0x1000, scoped, tag = 'output window, operand 0, single buffered']
    %13 = vsyncpa [#allocation3], 0
    %14 = vsyncpa [#allocation6], 0
    %15 = vsyncpa [#allocation9], 0
    %16 = vsyncpa [#allocation12], 0
    %17 = vsyncpa [#allocation4], 0
    // Predicated region
    $region2: #{_lambda_.1} parent=1 // pred_check
      _
    $region3: #{_lambda_.1} parent=1 // pred_check_branch
      %19 = sbr.rel (0) target = $region5
    $region4: #{_lambda_.1} parent=1 // pred_region
      _
    $region5: #{_lambda_.1} parent=1 // pred_fallthru
      _
    // Predicated region
    $region6: #{_lambda_.1} parent=1 // pred_check
      _
    $region7: #{_lambda_.1} parent=1 // pred_check_branch
      %21 = sbr.rel (0) target = $region9
    $region8: #{_lambda_.1} parent=1 // pred_region
      %s23 = ssub.s32 128, 128
      %24 = vsyncadd [#allocation3], %s23
      %s26 = sshll.u32 [#allocation2], 4
      %s27 = int_to_ptr.vmem [resolvable:$true] %s26
      %29 = dma.hbm_to_vmem [thread:$0]  %s1, 128, %s27, [#allocation3]
    $region9: #{_lambda_.1} parent=1 // pred_fallthru
      _
    // Predicated region
    $region10: #{_lambda_.1} parent=1 // pred_check
      _
    $region11: #{_lambda_.1} parent=1 // pred_check_branch
      %31 = sbr.rel (0) target = $region13
    $region12: #{_lambda_.1} parent=1 // pred_region
      %s33 = ssub.s32 128, 128
      %34 = vsyncadd [#allocation6], %s33
      %s36 = sshll.u32 [#allocation5], 4
      %s37 = int_to_ptr.vmem [resolvable:$true] %s36
      %39 = dma.hbm_to_vmem [thread:$0]  %s2, 128, %s37, [#allocation6]
    $region13: #{_lambda_.1} parent=1 // pred_fallthru
      _
    // Predicated region
    $region14: #{_lambda_.1} parent=1 // pred_check
      _
    $region15: #{_lambda_.1} parent=1 // pred_check_branch
      %41 = sbr.rel (0) target = $region17
    $region16: #{_lambda_.1} parent=1 // pred_region
      %s43 = ssub.s32 512, 512
      %44 = vsyncadd [#allocation6], %s43
      %s45 = sshll.u32 [#allocation7], 4
      %s46 = int_to_ptr.vmem [resolvable:$true] %s45
      %51 = dma.hbm_to_vmem [thread:$0]  %s3, 512, %s46, [#allocation6], 128, 128, 8
    $region17: #{_lambda_.1} parent=1 // pred_fallthru
      _
    // Predicated region
    $region18: #{_lambda_.1} parent=1 // pred_check
      _
    $region19: #{_lambda_.1} parent=1 // pred_check_branch
      %53 = sbr.rel (0) target = $region21
    $region20: #{_lambda_.1} parent=1 // pred_region
      %s55 = ssub.s32 512, 512
      %56 = vsyncadd [#allocation9], %s55
      %s57 = sshll.u32 [#allocation8], 4
      %s58 = int_to_ptr.vmem [resolvable:$true] %s57
      %63 = dma.hbm_to_vmem [thread:$0]  %s4, 512, %s58, [#allocation9], 128, 128, 8
    $region21: #{_lambda_.1} parent=1 // pred_fallthru
      _
    // Predicated region
    $region22: #{_lambda_.1} parent=1 // pred_check
      _
    $region23: #{_lambda_.1} parent=1 // pred_check_branch
      %65 = sbr.rel (0) target = $region25
    $region24: #{_lambda_.1} parent=1 // pred_region
      %s67 = ssub.s32 512, 512
      %68 = vsyncadd [#allocation9], %s67
      %s69 = sshll.u32 [#allocation10], 4
      %s70 = int_to_ptr.vmem [resolvable:$true] %s69
      %75 = dma.hbm_to_vmem [thread:$0]  %s5, 512, %s70, [#allocation9], 128, 128, 8
    $region25: #{_lambda_.1} parent=1 // pred_fallthru
      _
    // Predicated region
    $region26: #{_lambda_.1} parent=1 // pred_check
      _
    $region27: #{_lambda_.1} parent=1 // pred_check_branch
      %77 = sbr.rel (0) target = $region29
    $region28: #{_lambda_.1} parent=1 // pred_region
      %s79 = ssub.s32 512, 512
      %80 = vsyncadd [#allocation12], %s79
      %s81 = sshll.u32 [#allocation11], 4
      %s82 = int_to_ptr.vmem [resolvable:$true] %s81
      %87 = dma.hbm_to_vmem [thread:$0]  %s6, 512, %s82, [#allocation12], 128, 128, 8
    $region29: #{_lambda_.1} parent=1 // pred_fallthru
      _
    // Predicated region
    $region30: #{_lambda_.1} parent=1 // pred_check
      _
    $region31: #{_lambda_.1} parent=1 // pred_check_branch
      %89 = sbr.rel (0) target = $region33
    $region32: #{_lambda_.1} parent=1 // pred_region
      %s91 = ssub.s32 16, 16
      %92 = vsyncadd [#allocation12], %s91
      %s94 = sshll.u32 [#allocation13], 4
      %s95 = int_to_ptr.vmem [resolvable:$true] %s94
      %97 = dma.hbm_to_vmem [thread:$0]  %s7, 16, %s95, [#allocation12]
    $region33: #{_lambda_.1} parent=1 // pred_fallthru
      _
    // Predicated region
    $region34: #{_lambda_.1} parent=1 // pred_check
      _
    $region35: #{_lambda_.1} parent=1 // pred_check_branch
      %99 = sbr.rel (0) target = $region37
    $region36: #{_lambda_.1} parent=1 // pred_region
      %100 = dma.done [#allocation3], 128
    $region37: #{_lambda_.1} parent=1 // pred_fallthru
      _
    // Predicated region
    $region38: #{_lambda_.1} parent=1 // pred_check
      _
    $region39: #{_lambda_.1} parent=1 // pred_check_branch
      %102 = sbr.rel (0) target = $region41
    $region40: #{_lambda_.1} parent=1 // pred_region
      %103 = dma.done [#allocation6], 128
    $region41: #{_lambda_.1} parent=1 // pred_fallthru
      _
    // Predicated region
    $region42: #{_lambda_.1} parent=1 // pred_check
      _
    $region43: #{_lambda_.1} parent=1 // pred_check_branch
      %105 = sbr.rel (0) target = $region45
    $region44: #{_lambda_.1} parent=1 // pred_region
      %106 = dma.done [#allocation6], 512
    $region45: #{_lambda_.1} parent=1 // pred_fallthru
      _
    // Predicated region
    $region46: #{_lambda_.1} parent=1 // pred_check
      _
    $region47: #{_lambda_.1} parent=1 // pred_check_branch
      %108 = sbr.rel (0) target = $region49
    $region48: #{_lambda_.1} parent=1 // pred_region
      %109 = dma.done [#allocation9], 512
    $region49: #{_lambda_.1} parent=1 // pred_fallthru
      _
    // Predicated region
    $region50: #{_lambda_.1} parent=1 // pred_check
      _
    $region51: #{_lambda_.1} parent=1 // pred_check_branch
      %111 = sbr.rel (0) target = $region53
    $region52: #{_lambda_.1} parent=1 // pred_region
      %112 = dma.done [#allocation9], 512
    $region53: #{_lambda_.1} parent=1 // pred_fallthru
      _
    // Predicated region
    $region54: #{_lambda_.1} parent=1 // pred_check
      _
    $region55: #{_lambda_.1} parent=1 // pred_check_branch
      %114 = sbr.rel (0) target = $region57
    $region56: #{_lambda_.1} parent=1 // pred_region
      %115 = dma.done [#allocation12], 512
    $region57: #{_lambda_.1} parent=1 // pred_fallthru
      _
    // Predicated region
    $region58: #{_lambda_.1} parent=1 // pred_check
      _
    $region59: #{_lambda_.1} parent=1 // pred_check_branch
      %117 = sbr.rel (0) target = $region61
    $region60: #{_lambda_.1} parent=1 // pred_region
      %118 = dma.done [#allocation12], 16
    $region61: #{_lambda_.1} parent=1 // pred_fallthru
      _
    %v119 = vld [vmem:[%s0] sm:$0xff]
    %v120 = vld [vmem:[#allocation7] sm:$0xff]
    %v121 = vld [vmem:[#allocation7 + $0x8] sm:$0xff]
    %v122 = vld [vmem:[#allocation7 + $0x10] sm:$0xff]
    %v123 = vld [vmem:[#allocation7 + $0x18] sm:$0xff]
    %v124 = vld [vmem:[#allocation2] sm:$0xff]
    %v125 = vld [vmem:[#allocation8] sm:$0xff]
    %v126 = vld [vmem:[#allocation8 + $0x8] sm:$0xff]
    %v127 = vld [vmem:[#allocation8 + $0x10] sm:$0xff]
    %v128 = vld [vmem:[#allocation8 + $0x18] sm:$0xff]
    %vm129 = vcmask 261120
    %v131 = vsel %vm129, %v124, 0
    %133 = vmatprep.subr.mxu0 0.0
    %134 = vmatpush1.msra.mxu0 0.0
    %135 = vmatprep.subr.mxu0 0.0
    %136 = vmatpush1.msra.mxu0 0.0
    %137 = vmatprep.subr.mxu0 0.0
    %138 = vmatpush1.msra.mxu0 0.0
    %139 = vmatprep.subr.mxu0 0.0
    %140 = vmatpush1.msra.mxu0 0.0
    %141 = vmatprep.subr.mxu0 0.0
    %142 = vmatpush1.msra.mxu0 0.0
    %143 = vmatprep.subr.mxu0 0.0
    %144 = vmatpush1.msra.mxu0 0.0
    %145 = vmatprep.subr.mxu0 0.0
    %146 = vmatpush1.msra.mxu0 0.0
    %147 = vmatprep.subr.mxu0 0.0
    %148 = vmatpush1.msra.mxu0 0.0
    %149 = vmatprep.subr.mxu0 0.0
    %150 = vmatpush1.msra.mxu0 0.0
    %151 = vmatprep.subr.mxu0 0.0
    %152 = vmatpush1.msra.mxu0 0.0
    %153 = vmatprep.subr.mxu0 0.0
    %154 = vmatpush1.msra.mxu0 0.0
    %155 = vmatprep.subr.mxu0 0.0
    %156 = vmatpush1.msra.mxu0 0.0
    %157 = vmatprep.subr.mxu0 0.0
    %158 = vmatpush1.msra.mxu0 %v128
    %159 = vmatprep.subr.mxu0 0.0
    %160 = vmatpush1.msra.mxu0 %v127
    %161 = vmatprep.subr.mxu0 0.0
    %162 = vmatpush1.msra.mxu0 %v126
    %163 = vmatprep.subr.mxu0 0.0
    %164 = vmatpush1.msra.mxu0 %v125
    %165 = vmatprep.subr.mxu0 0.0
    %166 = vmatpush2.msra.mxu0 0.0
    %167 = vmatprep.subr.mxu0 0.0
    %168 = vmatpush2.msra.mxu0 0.0
    %169 = vmatprep.subr.mxu0 0.0
    %170 = vmatpush2.msra.mxu0 0.0
    %171 = vmatprep.subr.mxu0 0.0
    %172 = vmatpush2.msra.mxu0 0.0
    %173 = vmatprep.subr.mxu0 0.0
    %174 = vmatpush2.msra.mxu0 0.0
    %175 = vmatprep.subr.mxu0 0.0
    %176 = vmatpush2.msra.mxu0 0.0
    %177 = vmatprep.subr.mxu0 0.0
    %178 = vmatpush2.msra.mxu0 0.0
    %179 = vmatprep.subr.mxu0 0.0
    %180 = vmatpush2.msra.mxu0 0.0
    %181 = vmatprep.subr.mxu0 0.0
    %182 = vmatpush2.msra.mxu0 0.0
    %183 = vmatprep.subr.mxu0 0.0
    %184 = vmatpush2.msra.mxu0 0.0
    %185 = vmatprep.subr.mxu0 0.0
    %186 = vmatpush2.msra.mxu0 0.0
    %187 = vmatprep.subr.mxu0 0.0
    %188 = vmatpush2.msra.mxu0 0.0
    %189 = vmatprep.subr.mxu0 0.0
    %190 = vmatpush2.msra.mxu0 0.0
    %191 = vmatprep.subr.mxu0 0.0
    %192 = vmatpush2.msra.mxu0 0.0
    %193 = vmatprep.subr.mxu0 0.0
    %194 = vmatpush2.msra.mxu0 0.0
    %195 = vmatprep.subr.mxu0 0.0
    %196 = vmatpush2.msra.mxu0 0.0
    %197 = vmatprep.mubr.f32.mxu0 0.0
    %198 = vmatmul.mubr.f32.gmra.mxu0 %v131
    %v199 = vpop.f32.mrf.mxu0
    %v200 = vadd.f32 0.0, %v199
    %v201 = vpop.f32.mrf.mxu0
    %202 = vdwg.mxu0
    %v204 = vsel %vm129, %v119, 0
    %206 = vmatprep.subr.mxu0 0.0
    %207 = vmatpush1.msra.mxu0 0.0
    %208 = vmatprep.subr.mxu0 0.0
    %209 = vmatpush1.msra.mxu0 0.0
    %210 = vmatprep.subr.mxu0 0.0
    %211 = vmatpush1.msra.mxu0 0.0
    %212 = vmatprep.subr.mxu0 0.0
    %213 = vmatpush1.msra.mxu0 0.0
    %214 = vmatprep.subr.mxu0 0.0
    %215 = vmatpush1.msra.mxu0 0.0
    %216 = vmatprep.subr.mxu0 0.0
    %217 = vmatpush1.msra.mxu0 0.0
    %218 = vmatprep.subr.mxu0 0.0
    %219 = vmatpush1.msra.mxu0 0.0
    %220 = vmatprep.subr.mxu0 0.0
    %221 = vmatpush1.msra.mxu0 0.0
    %222 = vmatprep.subr.mxu0 0.0
    %223 = vmatpush1.msra.mxu0 0.0
    %224 = vmatprep.subr.mxu0 0.0
    %225 = vmatpush1.msra.mxu0 0.0
    %226 = vmatprep.subr.mxu0 0.0
    %227 = vmatpush1.msra.mxu0 0.0
    %228 = vmatprep.subr.mxu0 0.0
    %229 = vmatpush1.msra.mxu0 0.0
    %230 = vmatprep.subr.mxu0 0.0
    %231 = vmatpush1.msra.mxu0 %v123
    %232 = vmatprep.subr.mxu0 0.0
    %233 = vmatpush1.msra.mxu0 %v122
    %234 = vmatprep.subr.mxu0 0.0
    %235 = vmatpush1.msra.mxu0 %v121
    %236 = vmatprep.subr.mxu0 0.0
    %237 = vmatpush1.msra.mxu0 %v120
    %238 = vmatprep.subr.mxu0 0.0
    %239 = vmatpush2.msra.mxu0 0.0
    %240 = vmatprep.subr.mxu0 0.0
    %241 = vmatpush2.msra.mxu0 0.0
    %242 = vmatprep.subr.mxu0 0.0
    %243 = vmatpush2.msra.mxu0 0.0
    %244 = vmatprep.subr.mxu0 0.0
    %245 = vmatpush2.msra.mxu0 0.0
    %246 = vmatprep.subr.mxu0 0.0
    %247 = vmatpush2.msra.mxu0 0.0
    %248 = vmatprep.subr.mxu0 0.0
    %249 = vmatpush2.msra.mxu0 0.0
    %250 = vmatprep.subr.mxu0 0.0
    %251 = vmatpush2.msra.mxu0 0.0
    %252 = vmatprep.subr.mxu0 0.0
    %253 = vmatpush2.msra.mxu0 0.0
    %254 = vmatprep.subr.mxu0 0.0
    %255 = vmatpush2.msra.mxu0 0.0
    %256 = vmatprep.subr.mxu0 0.0
    %257 = vmatpush2.msra.mxu0 0.0
    %258 = vmatprep.subr.mxu0 0.0
    %259 = vmatpush2.msra.mxu0 0.0
    %260 = vmatprep.subr.mxu0 0.0
    %261 = vmatpush2.msra.mxu0 0.0
    %262 = vmatprep.subr.mxu0 0.0
    %263 = vmatpush2.msra.mxu0 0.0
    %264 = vmatprep.subr.mxu0 0.0
    %265 = vmatpush2.msra.mxu0 0.0
    %266 = vmatprep.subr.mxu0 0.0
    %267 = vmatpush2.msra.mxu0 0.0
    %268 = vmatprep.subr.mxu0 0.0
    %269 = vmatpush2.msra.mxu0 0.0
    %270 = vmatprep.mubr.f32.mxu0 0.0
    %271 = vmatmul.mubr.f32.gmra.mxu0 %v204
    %v272 = vpop.f32.mrf.mxu0
    %v273 = vadd.f32 %v200, %v272
    %v274 = vpop.f32.mrf.mxu0
    %275 = vdwg.mxu0
    %v276 = vld [vmem:[#allocation5] sm:$0xff]
    %v277 = vld [vmem:[#allocation10] sm:$0xff]
    %v278 = vld [vmem:[#allocation10 + $0x8] sm:$0xff]
    %v279 = vld [vmem:[#allocation10 + $0x10] sm:$0xff]
    %v280 = vld [vmem:[#allocation10 + $0x18] sm:$0xff]
    %v282 = vsel %vm129, %v276, 0
    %284 = vmatprep.subr.mxu0 0.0
    %285 = vmatpush1.msra.mxu0 0.0
    %286 = vmatprep.subr.mxu0 0.0
    %287 = vmatpush1.msra.mxu0 0.0
    %288 = vmatprep.subr.mxu0 0.0
    %289 = vmatpush1.msra.mxu0 0.0
    %290 = vmatprep.subr.mxu0 0.0
    %291 = vmatpush1.msra.mxu0 0.0
    %292 = vmatprep.subr.mxu0 0.0
    %293 = vmatpush1.msra.mxu0 0.0
    %294 = vmatprep.subr.mxu0 0.0
    %295 = vmatpush1.msra.mxu0 0.0
    %296 = vmatprep.subr.mxu0 0.0
    %297 = vmatpush1.msra.mxu0 0.0
    %298 = vmatprep.subr.mxu0 0.0
    %299 = vmatpush1.msra.mxu0 0.0
    %300 = vmatprep.subr.mxu0 0.0
    %301 = vmatpush1.msra.mxu0 0.0
    %302 = vmatprep.subr.mxu0 0.0
    %303 = vmatpush1.msra.mxu0 0.0
    %304 = vmatprep.subr.mxu0 0.0
    %305 = vmatpush1.msra.mxu0 0.0
    %306 = vmatprep.subr.mxu0 0.0
    %307 = vmatpush1.msra.mxu0 0.0
    %308 = vmatprep.subr.mxu0 0.0
    %309 = vmatpush1.msra.mxu0 %v280
    %310 = vmatprep.subr.mxu0 0.0
    %311 = vmatpush1.msra.mxu0 %v279
    %312 = vmatprep.subr.mxu0 0.0
    %313 = vmatpush1.msra.mxu0 %v278
    %314 = vmatprep.subr.mxu0 0.0
    %315 = vmatpush1.msra.mxu0 %v277
    %316 = vmatprep.subr.mxu0 0.0
    %317 = vmatpush2.msra.mxu0 0.0
    %318 = vmatprep.subr.mxu0 0.0
    %319 = vmatpush2.msra.mxu0 0.0
    %320 = vmatprep.subr.mxu0 0.0
    %321 = vmatpush2.msra.mxu0 0.0
    %322 = vmatprep.subr.mxu0 0.0
    %323 = vmatpush2.msra.mxu0 0.0
    %324 = vmatprep.subr.mxu0 0.0
    %325 = vmatpush2.msra.mxu0 0.0
    %326 = vmatprep.subr.mxu0 0.0
    %327 = vmatpush2.msra.mxu0 0.0
    %328 = vmatprep.subr.mxu0 0.0
    %329 = vmatpush2.msra.mxu0 0.0
    %330 = vmatprep.subr.mxu0 0.0
    %331 = vmatpush2.msra.mxu0 0.0
    %332 = vmatprep.subr.mxu0 0.0
    %333 = vmatpush2.msra.mxu0 0.0
    %334 = vmatprep.subr.mxu0 0.0
    %335 = vmatpush2.msra.mxu0 0.0
    %336 = vmatprep.subr.mxu0 0.0
    %337 = vmatpush2.msra.mxu0 0.0
    %338 = vmatprep.subr.mxu0 0.0
    %339 = vmatpush2.msra.mxu0 0.0
    %340 = vmatprep.subr.mxu0 0.0
    %341 = vmatpush2.msra.mxu0 0.0
    %342 = vmatprep.subr.mxu0 0.0
    %343 = vmatpush2.msra.mxu0 0.0
    %344 = vmatprep.subr.mxu0 0.0
    %345 = vmatpush2.msra.mxu0 0.0
    %346 = vmatprep.subr.mxu0 0.0
    %347 = vmatpush2.msra.mxu0 0.0
    %348 = vmatprep.mubr.f32.mxu0 0.0
    %349 = vmatmul.mubr.f32.gmra.mxu0 %v282
    %v350 = vpop.f32.mrf.mxu0
    %v351 = vadd.f32 0.0, %v350
    %v352 = vpop.f32.mrf.mxu0
    %353 = vdwg.mxu0
    %v354 = vadd.f32 %v273, %v351
    %v355 = vld [vmem:[#allocation11] sm:$0xff]
    %v356 = vld [vmem:[#allocation11 + $0x8] sm:$0xff]
    %v357 = vld [vmem:[#allocation11 + $0x10] sm:$0xff]
    %v358 = vld [vmem:[#allocation11 + $0x18] sm:$0xff]
    %v359 = vld [vmem:[#allocation13] sm:$0x1]
    %v361 = vlaneseq
    %v362 = vshrl.u32 %v361, 7
    %v363 = vsub.s32 0, %v362
    %v364 = vrot.slane %v359, %v363
    %v367 = vsel %vm129, %v354, 0
    %369 = vmatprep.subr.mxu0 0.0
    %370 = vmatpush1.msra.mxu0 0.0
    %371 = vmatprep.subr.mxu0 0.0
    %372 = vmatpush1.msra.mxu0 0.0
    %373 = vmatprep.subr.mxu0 0.0
    %374 = vmatpush1.msra.mxu0 0.0
    %375 = vmatprep.subr.mxu0 0.0
    %376 = vmatpush1.msra.mxu0 0.0
    %377 = vmatprep.subr.mxu0 0.0
    %378 = vmatpush1.msra.mxu0 0.0
    %379 = vmatprep.subr.mxu0 0.0
    %380 = vmatpush1.msra.mxu0 0.0
    %381 = vmatprep.subr.mxu0 0.0
    %382 = vmatpush1.msra.mxu0 0.0
    %383 = vmatprep.subr.mxu0 0.0
    %384 = vmatpush1.msra.mxu0 0.0
    %385 = vmatprep.subr.mxu0 0.0
    %386 = vmatpush1.msra.mxu0 0.0
    %387 = vmatprep.subr.mxu0 0.0
    %388 = vmatpush1.msra.mxu0 0.0
    %389 = vmatprep.subr.mxu0 0.0
    %390 = vmatpush1.msra.mxu0 0.0
    %391 = vmatprep.subr.mxu0 0.0
    %392 = vmatpush1.msra.mxu0 0.0
    %393 = vmatprep.subr.mxu0 0.0
    %394 = vmatpush1.msra.mxu0 %v358
    %395 = vmatprep.subr.mxu0 0.0
    %396 = vmatpush1.msra.mxu0 %v357
    %397 = vmatprep.subr.mxu0 0.0
    %398 = vmatpush1.msra.mxu0 %v356
    %399 = vmatprep.subr.mxu0 0.0
    %400 = vmatpush1.msra.mxu0 %v355
    %401 = vmatprep.subr.mxu0 0.0
    %402 = vmatpush2.msra.mxu0 0.0
    %403 = vmatprep.subr.mxu0 0.0
    %404 = vmatpush2.msra.mxu0 0.0
    %405 = vmatprep.subr.mxu0 0.0
    %406 = vmatpush2.msra.mxu0 0.0
    %407 = vmatprep.subr.mxu0 0.0
    %408 = vmatpush2.msra.mxu0 0.0
    %409 = vmatprep.subr.mxu0 0.0
    %410 = vmatpush2.msra.mxu0 0.0
    %411 = vmatprep.subr.mxu0 0.0
    %412 = vmatpush2.msra.mxu0 0.0
    %413 = vmatprep.subr.mxu0 0.0
    %414 = vmatpush2.msra.mxu0 0.0
    %415 = vmatprep.subr.mxu0 0.0
    %416 = vmatpush2.msra.mxu0 0.0
    %417 = vmatprep.subr.mxu0 0.0
    %418 = vmatpush2.msra.mxu0 0.0
    %419 = vmatprep.subr.mxu0 0.0
    %420 = vmatpush2.msra.mxu0 0.0
    %421 = vmatprep.subr.mxu0 0.0
    %422 = vmatpush2.msra.mxu0 0.0
    %423 = vmatprep.subr.mxu0 0.0
    %424 = vmatpush2.msra.mxu0 0.0
    %425 = vmatprep.subr.mxu0 0.0
    %426 = vmatpush2.msra.mxu0 0.0
    %427 = vmatprep.subr.mxu0 0.0
    %428 = vmatpush2.msra.mxu0 0.0
    %429 = vmatprep.subr.mxu0 0.0
    %430 = vmatpush2.msra.mxu0 0.0
    %431 = vmatprep.subr.mxu0 0.0
    %432 = vmatpush2.msra.mxu0 0.0
    %433 = vmatprep.mubr.f32.mxu0 0.0
    %434 = vmatmul.mubr.f32.gmra.mxu0 %v367
    %v435 = vpop.f32.mrf.mxu0
    %v436 = vadd.f32 %v364, %v435
    %v437 = vpop.f32.mrf.mxu0
    %438 = vdwg.mxu0
    %439 = vst.msk [vmem:[#allocation14] sm:$0xff] %vm129, %v436
    // Predicated region
    $region62: #{_lambda_.1} parent=1 // pred_check
      _
    $region63: #{_lambda_.1} parent=1 // pred_check_branch
      %441 = sbr.rel (0) target = $region65
    $region64: #{_lambda_.1} parent=1 // pred_region
      %s443 = ssub.s32 128, 128
      %444 = vsyncadd [#allocation4], %s443
      %s446 = sshll.u32 [#allocation14], 4
      %s447 = int_to_ptr.vmem [resolvable:$true] %s446
      %449 = dma.vmem_to_hbm [thread:$0]  %s447, 128, %s8, [#allocation4]
    $region65: #{_lambda_.1} parent=1 // pred_fallthru
      _
    // Predicated region
    $region66: #{_lambda_.1} parent=1 // pred_check
      _
    $region67: #{_lambda_.1} parent=1 // pred_check_branch
      %451 = sbr.rel (0) target = $region69
    $region68: #{_lambda_.1} parent=1 // pred_region
      %452 = dma.done [#allocation4], 128
    $region69: #{_lambda_.1} parent=1 // pred_fallthru
      _
    %453 = vsyncpa [#allocation3], 1
    %454 = vsyncpa [#allocation6], 1
    %455 = vsyncpa [#allocation9], 1
    %456 = vsyncpa [#allocation12], 1
    %457 = vsyncpa [#allocation4], 1

</llo_original>
